<compile_context>
chip_gen: v6e
topology: v6e:2x2x1
jax: 0.10.0
libtpu: 0.0.40
codegen_flags: <defaults>
</compile_context>

<pallas_src>
import jax
import jax.numpy as jnp
from jax.experimental import pallas as pl
from jax.experimental.pallas import tpu as pltpu


# ----------------------------------------------------------------------------
# Kernel body (shared by single-network and fused online+target calls: in the
# fused call the leading "network" dim is squeezed away by the BlockSpecs, so
# every ref still looks 2-D here).
# ----------------------------------------------------------------------------
def dqn_kernel(x_ref, w1_ref, b1_ref, w2_ref, b2_ref, o_ref):
    x = x_ref[...]
    # fc1: x @ W1 + b1, ReLU.  Only the dot operand is cast to the weight
    # dtype (bf16 by default); accumulation is f32 on the MXU.
    h = jnp.dot(x.astype(w1_ref.dtype), w1_ref[...],
                preferred_element_type=jnp.float32)
    h = h + b1_ref[...]          # (1, H1p) broadcasts over the batch tile
    h = jnp.maximum(h, 0.0)      # ReLU in f32 on the VPU (v5e-safe)
    # out: h @ W2 + b2
    y = jnp.dot(h.astype(w2_ref.dtype), w2_ref[...],
                preferred_element_type=jnp.float32)
    y = y + b2_ref[...]
    o_ref[...] = y.astype(o_ref.dtype)


# ----------------------------------------------------------------------------
# Helpers
# ----------------------------------------------------------------------------
def _cdiv(a, b):
    return -(-a // b)


def _round_up(n, m):
    return ((n + m - 1) // m) * m


def _pad_to(a, shape):
    pads = [(0, t - s) for s, t in zip(a.shape, shape)]
    return jnp.pad(a, pads) if any(p[1] for p in pads) else a


def _num_tensorcores():
    """TensorCores per chip (2 on megacore/v7x, else 1).  Safe fallback to 1."""
    try:
        return max(1, int(getattr(jax.devices()[0], "num_cores", 1)))
    except Exception:  # pragma: no cover
        return 1


# ----------------------------------------------------------------------------
# One-time parameter packing (hoisted out of the per-call path).
# ----------------------------------------------------------------------------
def prepare_dqn_params(w1, b1, w2, b2, *, weight_dtype=jnp.bfloat16):
    """Pad/cast params to kernel layout ONCE (at init / target-network sync).

    Layout (note: weights are [in, out], i.e. transposed vs. PyTorch storage):
      w1: [in_states, h1_p]  weight_dtype   (h1_p  = round_up(h1, 128))
      b1: [1, h1_p]          float32
      w2: [h1_p, out_p]      weight_dtype   (out_p = round_up(out, 128))
      b2: [1, out_p]         float32
    Zero padding is exact for matmul / bias / ReLU; padded output columns are
    exactly 0 and are sliced off by the forward wrapper.
    """
    in_states, h1 = w1.shape
    out_actions = w2.shape[1]
    h1_p = _round_up(h1, 128)
    out_p = _round_up(out_actions, 128)
    f32 = jnp.float32
    w1p = _pad_to(w1.astype(f32), (in_states, h1_p)).astype(weight_dtype)
    b1p = _pad_to(b1.astype(f32), (1, h1_p))
    w2p = _pad_to(w2.astype(f32), (h1_p, out_p)).astype(weight_dtype)
    b2p = _pad_to(b2.astype(f32), (1, out_p))
    return (w1p, b1p, w2p, b2p)


def stack_dqn_params(params_a, params_b):
    """Stack two packed param sets (e.g. online + target) along a leading axis.

    Call once per target-network sync, NOT per forward call.
    """
    return tuple(jnp.stack([a, b]) for a, b in zip(params_a, params_b))


# ----------------------------------------------------------------------------
# Forward: single network.
# ----------------------------------------------------------------------------
def dqn_forward(x, params, out_actions, *, num_batch_tiles=None):
    """Fused DQN forward: relu(x @ w1 + b1) @ w2 + b2 -> [B, out_actions] f32.

    `params` must come from prepare_dqn_params().  `x` is the raw [B, in] f32
    batch of states (no padding required from the caller).
    """
    w1p, b1p, w2p, b2p = params
    B, in_states = x.shape
    h1_p = w1p.shape[1]
    out_p = w2p.shape[1]

    # Batch tiling: one tile per TensorCore (1 on v5e/v6e, 2 on v7x/megacore),
    # each a multiple of 8 sublanes.  Only the batch rows of x are padded.
    nt = int(num_batch_tiles) if num_batch_tiles else _num_tensorcores()
    tb = _round_up(_cdiv(B, nt), 8)
    bp = tb * nt
    xp = _pad_to(x.astype(jnp.float32), (bp, in_states))

    wbytes = jnp.dtype(w1p.dtype).itemsize
    cost = pl.CostEstimate(
        flops=2 * bp * (in_states * h1_p + h1_p * out_p),
        transcendentals=0,
        bytes_accessed=(xp.size * 4 + w1p.size * wbytes + b1p.size * 4
                        + w2p.size * wbytes + b2p.size * 4 + bp * out_p * 4),
    )

    out = pl.pallas_call(
        dqn_kernel,
        out_shape=jax.ShapeDtypeStruct((bp, out_p), jnp.float32),
        grid=(nt,),
        in_specs=[
            # x at its natural feature width (block dim == full array dim).
            pl.BlockSpec((tb, in_states), lambda i: (i, 0)),
            # Weights/biases: constant index_maps -> VMEM-resident across steps.
            pl.BlockSpec((in_states, h1_p), lambda i: (0, 0)),
            pl.BlockSpec((1, h1_p), lambda i: (0, 0)),
            pl.BlockSpec((h1_p, out_p), lambda i: (0, 0)),
            pl.BlockSpec((1, out_p), lambda i: (0, 0)),
        ],
        out_specs=pl.BlockSpec((tb, out_p), lambda i: (i, 0)),
        compiler_params=pltpu.CompilerParams(
            dimension_semantics=("parallel",)),  # 2-TC chips split the batch
        cost_estimate=cost,
    )(xp, w1p, b1p, w2p, b2p)

    # Padded columns are exactly 0.0 -- keep this slice (or mask to -inf in the
    # consumer) before any argmax action selection.
    return out[:B, :out_actions]


# ----------------------------------------------------------------------------
# Forward: fused online + target networks in ONE pallas_call.
# ----------------------------------------------------------------------------
def dqn_forward_pair(x_a, x_b, stacked_params, out_actions, *,
                     num_batch_tiles=1):
    """Compute Q(x_a; net A) and Q(x_b; net B) in a single launch.

    `stacked_params` must come from stack_dqn_params(prepare_dqn_params(...),
    prepare_dqn_params(...)).  The network axis is a "parallel" grid axis, so
    on 2-TC chips each core handles one network.
    """
    w1s, b1s, w2s, b2s = stacked_params
    assert x_a.shape == x_b.shape, "online/target batches must match"
    B, in_states = x_a.shape
    h1_p = w1s.shape[2]
    out_p = w2s.shape[2]

    nt = max(1, int(num_batch_tiles))
    tb = _round_up(_cdiv(B, nt), 8)
    bp = tb * nt
    xa = _pad_to(x_a.astype(jnp.float32), (bp, in_states))
    xb = _pad_to(x_b.astype(jnp.float32), (bp, in_states))
    xs = jnp.stack([xa, xb])                       # [2, bp, in] (tiny copy)

    wbytes = jnp.dtype(w1s.dtype).itemsize
    cost = pl.CostEstimate(
        flops=2 * 2 * bp * (in_states * h1_p + h1_p * out_p),
        transcendentals=0,
        bytes_accessed=(xs.size * 4 + w1s.size * wbytes + b1s.size * 4
                        + w2s.size * wbytes + b2s.size * 4
                        + 2 * bp * out_p * 4),
    )

    out = pl.pallas_call(
        dqn_kernel,
        out_shape=jax.ShapeDtypeStruct((2, bp, out_p), jnp.float32),
        grid=(2, nt),                              # (network, batch tile)
        in_specs=[
            pl.BlockSpec((None, tb, in_states), lambda n, i: (n, i, 0)),
            pl.BlockSpec((None, in_states, h1_p), lambda n, i: (n, 0, 0)),
            pl.BlockSpec((None, 1, h1_p), lambda n, i: (n, 0, 0)),
            pl.BlockSpec((None, h1_p, out_p), lambda n, i: (n, 0, 0)),
            pl.BlockSpec((None, 1, out_p), lambda n, i: (n, 0, 0)),
        ],
        out_specs=pl.BlockSpec((None, tb, out_p), lambda n, i: (n, i, 0)),
        compiler_params=pltpu.CompilerParams(
            dimension_semantics=("parallel", "parallel")),
        cost_estimate=cost,
    )(xs, w1s, b1s, w2s, b2s)

    return out[0, :B, :out_actions], out[1, :B, :out_actions]


# ----------------------------------------------------------------------------
# Init (nn.Linear-style), weights stored [in, out] (transposed vs PyTorch).
# ----------------------------------------------------------------------------
def init_dqn_params(key, in_states, h1_nodes, out_actions):
    k1, k2, k3, k4 = jax.random.split(key, 4)
    bound1 = 1.0 / jnp.sqrt(jnp.float32(in_states))
    bound2 = 1.0 / jnp.sqrt(jnp.float32(h1_nodes))
    w1 = jax.random.uniform(k1, (in_states, h1_nodes), jnp.float32, -bound1, bound1)
    b1 = jax.random.uniform(k2, (1, h1_nodes), jnp.float32, -bound1, bound1)
    w2 = jax.random.uniform(k3, (h1_nodes, out_actions), jnp.float32, -bound2, bound2)
    b2 = jax.random.uniform(k4, (1, out_actions), jnp.float32, -bound2, bound2)
    return w1, b1, w2, b2


if __name__ == "__main__":
    # Tic-Tac-Toe sizes: 9 board cells in, hidden 32, 9 actions out.
    in_states, h1_nodes, out_actions = 9, 32, 9

    key = jax.random.PRNGKey(0)
    kx1, kx2, kx3, kp1, kp2 = jax.random.split(key, 5)

    def ref_fwd_f32(x, w1, b1, w2, b2):
        return jnp.maximum(x @ w1 + b1, 0.0) @ w2 + b2

    def ref_fwd_bf16(x, w1, b1, w2, b2):
        h = jnp.maximum(
            jnp.dot(x.astype(jnp.bfloat16), w1.astype(jnp.bfloat16),
                    preferred_element_type=jnp.float32) + b1, 0.0)
        return jnp.dot(h.astype(jnp.bfloat16), w2.astype(jnp.bfloat16),
                       preferred_element_type=jnp.float32) + b2

    # Online network params.
    w1, b1, w2, b2 = init_dqn_params(kp1, in_states, h1_nodes, out_actions)

    # --- single network, odd batch (exercises batch-row padding + slice) ----
    B1 = 37
    x1 = jax.random.normal(kx1, (B1, in_states), jnp.float32)

    params_f32 = prepare_dqn_params(w1, b1, w2, b2, weight_dtype=jnp.float32)
    q_f32 = jax.block_until_ready(dqn_forward(x1, params_f32, out_actions))
    assert q_f32.shape == (B1, out_actions)
    assert jnp.allclose(q_f32, ref_fwd_f32(x1, w1, b1, w2, b2),
                        atol=1e-5, rtol=1e-5)

    # --- single network, bf16 weights (default; valid on v5e/v6e/v7x) -------
    B2 = 64
    x2 = jax.random.normal(kx2, (B2, in_states), jnp.float32)
    params_bf16 = prepare_dqn_params(w1, b1, w2, b2)  # packed once, reused
    q_bf16 = jax.block_until_ready(dqn_forward(x2, params_bf16, out_actions))
    assert q_bf16.shape == (B2, out_actions)
    assert jnp.allclose(q_bf16, ref_fwd_bf16(x2, w1, b1, w2, b2),
                        atol=2e-2, rtol=2e-2)

    # --- fused online + target networks in one pallas_call ------------------
    w1t, b1t, w2t, b2t = init_dqn_params(kp2, in_states, h1_nodes, out_actions)
    params_tgt = prepare_dqn_params(w1t, b1t, w2t, b2t)
    stacked = stack_dqn_params(params_bf16, params_tgt)  # once per target sync

    x_next = jax.random.normal(kx3, (B2, in_states), jnp.float32)
    q_on, q_tgt = dqn_forward_pair(x2, x_next, stacked, out_actions)
    jax.block_until_ready((q_on, q_tgt))
    assert q_on.shape == (B2, out_actions) and q_tgt.shape == (B2, out_actions)
    assert jnp.allclose(q_on, ref_fwd_bf16(x2, w1, b1, w2, b2),
                        atol=2e-2, rtol=2e-2)
    assert jnp.allclose(q_tgt, ref_fwd_bf16(x_next, w1t, b1t, w2t, b2t),
                        atol=2e-2, rtol=2e-2)

    print("KERNEL_OK")
</pallas_src>

<mosaic_0001>
module attributes {stable_mosaic.version = 11 : i64} {
  func.func @dqn_kernel(%arg0: i32, %arg1: memref<40x9xf32, #tpu.memory_space<vmem>>, %arg2: memref<9x128xf32, #tpu.memory_space<vmem>>, %arg3: memref<1x128xf32, #tpu.memory_space<vmem>>, %arg4: memref<128x128xf32, #tpu.memory_space<vmem>>, %arg5: memref<1x128xf32, #tpu.memory_space<vmem>>, %arg6: memref<40x128xf32, #tpu.memory_space<vmem>>) attributes {dimension_semantics = [#tpu.dimension_semantics<parallel>], iteration_bounds = array<i64: 1>, scalar_prefetch = 0 : i64, scratch_operands = 0 : i64, tpu.core_type = #tpu.core_type<tc>, window_params = [{transform_indices = @transform_0, window_bounds = array<i64: 40, 9>}, {pipeline_mode = #tpu.pipeline_mode<synchronous>, transform_indices = @transform_1, window_bounds = array<i64: 9, 128>}, {pipeline_mode = #tpu.pipeline_mode<synchronous>, transform_indices = @transform_2, window_bounds = array<i64: 1, 128>}, {pipeline_mode = #tpu.pipeline_mode<synchronous>, transform_indices = @transform_3, window_bounds = array<i64: 128, 128>}, {pipeline_mode = #tpu.pipeline_mode<synchronous>, transform_indices = @transform_4, window_bounds = array<i64: 1, 128>}, {transform_indices = @transform_5, window_bounds = array<i64: 40, 128>}]} {
    %c0 = arith.constant 0 : index
    %c0_0 = arith.constant 0 : index
    %0 = vector.load %arg1[%c0, %c0_0] : memref<40x9xf32, #tpu.memory_space<vmem>>, vector<40x9xf32>
    %c0_1 = arith.constant 0 : index
    %c0_2 = arith.constant 0 : index
    %1 = vector.load %arg2[%c0_1, %c0_2] : memref<9x128xf32, #tpu.memory_space<vmem>>, vector<9x128xf32>
    %cst = arith.constant dense<0.000000e+00> : vector<40x128xf32>
    %2 = tpu.matmul %0, %1, %cst {dimension_numbers = #tpu.dot_dimension_numbers<[1], [0], [0], [1], [0, 0, 1, 1], [], []>} : vector<40x9xf32>, vector<9x128xf32>, vector<40x128xf32> -> vector<40x128xf32>
    %c0_3 = arith.constant 0 : index
    %c0_4 = arith.constant 0 : index
    %3 = vector.load %arg3[%c0_3, %c0_4] : memref<1x128xf32, #tpu.memory_space<vmem>>, vector<1x128xf32>
    %4 = vector.broadcast %3 : vector<1x128xf32> to vector<40x128xf32>
    %5 = arith.addf %2, %4 : vector<40x128xf32>
    %cst_5 = arith.constant 0.000000e+00 : f32
    %6 = vector.broadcast %cst_5 : f32 to vector<40x128xf32>
    %7 = arith.maximumf %5, %6 : vector<40x128xf32>
    %c0_6 = arith.constant 0 : index
    %c0_7 = arith.constant 0 : index
    %8 = vector.load %arg4[%c0_6, %c0_7] : memref<128x128xf32, #tpu.memory_space<vmem>>, vector<128x128xf32>
    %cst_8 = arith.constant dense<0.000000e+00> : vector<40x128xf32>
    %9 = tpu.matmul %7, %8, %cst_8 {dimension_numbers = #tpu.dot_dimension_numbers<[1], [0], [0], [1], [0, 0, 1, 1], [], []>} : vector<40x128xf32>, vector<128x128xf32>, vector<40x128xf32> -> vector<40x128xf32>
    %c0_9 = arith.constant 0 : index
    %c0_10 = arith.constant 0 : index
    %10 = vector.load %arg5[%c0_9, %c0_10] : memref<1x128xf32, #tpu.memory_space<vmem>>, vector<1x128xf32>
    %11 = vector.broadcast %10 : vector<1x128xf32> to vector<40x128xf32>
    %12 = arith.addf %9, %11 : vector<40x128xf32>
    %c0_11 = arith.constant 0 : index
    %c0_12 = arith.constant 0 : index
    %13 = vector.load %arg6[%c0_11, %c0_12] : memref<40x128xf32, #tpu.memory_space<vmem>>, vector<40x128xf32>
    tpu.vector_store %arg6[%c0_11, %c0_12], %12 {strides = array<i32>} : memref<40x128xf32, #tpu.memory_space<vmem>>, vector<40x128xf32>,
    return
  }
  func.func @transform_0(%arg0: i32) -> (i32, i32) {
    %c0_i32 = arith.constant 0 : i32
    %c0_i32_0 = arith.constant 0 : i32
    return %arg0, %c0_i32 : i32, i32
  }
  func.func @transform_1(%arg0: i32) -> (i32, i32) {
    %c0_i32 = arith.constant 0 : i32
    %c0_i32_0 = arith.constant 0 : i32
    %c0_i32_1 = arith.constant 0 : i32
    return %c0_i32, %c0_i32_0 : i32, i32
  }
  func.func @transform_2(%arg0: i32) -> (i32, i32) {
    %c0_i32 = arith.constant 0 : i32
    %c0_i32_0 = arith.constant 0 : i32
    %c0_i32_1 = arith.constant 0 : i32
    return %c0_i32, %c0_i32_0 : i32, i32
  }
  func.func @transform_3(%arg0: i32) -> (i32, i32) {
    %c0_i32 = arith.constant 0 : i32
    %c0_i32_0 = arith.constant 0 : i32
    %c0_i32_1 = arith.constant 0 : i32
    return %c0_i32, %c0_i32_0 : i32, i32
  }
  func.func @transform_4(%arg0: i32) -> (i32, i32) {
    %c0_i32 = arith.constant 0 : i32
    %c0_i32_0 = arith.constant 0 : i32
    %c0_i32_1 = arith.constant 0 : i32
    return %c0_i32, %c0_i32_0 : i32, i32
  }
  func.func @transform_5(%arg0: i32) -> (i32, i32) {
    %c0_i32 = arith.constant 0 : i32
    %c0_i32_0 = arith.constant 0 : i32
    return %arg0, %c0_i32 : i32, i32
  }
}

</mosaic_0001>

<llo_original>
// kernel: tpu_custom_call.1
$region0: #{tpu_custom_call.1}
  #allocation0 [shape = 'u32[]', space=smem, size = 0x4, offset = 0x4, fixed_abs, tag = 'smem constant byte address 0x4 - core index']
  #allocation1 [shape = 'u32[144,128]{1,0:T(1,128)}', space=vmem, size = 0x12000, scoped, tag = 'internal scratch']
  %s0 = inlined_call_operand.vmem [shape: f32[40,9], index: 0, kind: input, shape index: {}]
  %s1 = inlined_call_operand.vmem [shape: f32[9,128], index: 1, kind: input, shape index: {}]
  %s2 = inlined_call_operand.vmem [shape: f32[1,128], index: 2, kind: input, shape index: {}]
  %s3 = inlined_call_operand.hbm [shape: f32[128,128], index: 3, kind: input, shape index: {}]
  %s4 = inlined_call_operand.vmem [shape: f32[1,128], index: 4, kind: input, shape index: {}]
  %s5 = inlined_call_operand.hbm [shape: f32[40,128], index: 5, kind: output, shape index: {}]
  %s6 = sld [smem:[#allocation0]]
  $region34: #{tpu_custom_call.1} parent=0
    _
  %s8 = ssub.s32 1, %s6
  %s9 = scalar_select 0, %s8, %s6
  $region1: #{tpu_custom_call.1} parent=0
    #allocation2 [shape = 'u8[65536]{0}', space=vmem, size = 0x10000, scoped, tag = 'input window, operand 3, single buffered']
    #allocation3 [shape = 's32[1]{0}', space=sflag, size = 0x4, scoped, tag = 'scoped memory for tpu_custom_call.1']
    #allocation4 [shape = 's32[1]{0}', space=sflag, size = 0x4, scoped, tag = 'scoped memory for tpu_custom_call.1']
    #allocation5 [shape = 'u8[20480]{0}', space=vmem, size = 0x5000, scoped, tag = 'output window, operand 0, single buffered']
    %10 = vsyncpa [#allocation3], 0
    %11 = vsyncpa [#allocation4], 0
    // Predicated region
    $region2: #{tpu_custom_call.1} parent=1 // pred_check
      _
    $region3: #{tpu_custom_call.1} parent=1 // pred_check_branch
      %13 = sbr.rel (0) target = $region5
    $region4: #{tpu_custom_call.1} parent=1 // pred_region
      _
    $region5: #{tpu_custom_call.1} parent=1 // pred_fallthru
      _
    // Predicated region
    $region6: #{tpu_custom_call.1} parent=1 // pred_check
      _
    $region7: #{tpu_custom_call.1} parent=1 // pred_check_branch
      %15 = sbr.rel (0) target = $region9
    $region8: #{tpu_custom_call.1} parent=1 // pred_region
      _
    $region9: #{tpu_custom_call.1} parent=1 // pred_fallthru
      _
    // Predicated region
    $region10: #{tpu_custom_call.1} parent=1 // pred_check
      _
    $region11: #{tpu_custom_call.1} parent=1 // pred_check_branch
      %17 = sbr.rel (0) target = $region13
    $region12: #{tpu_custom_call.1} parent=1 // pred_region
      _
    $region13: #{tpu_custom_call.1} parent=1 // pred_fallthru
      _
    // Predicated region
    $region14: #{tpu_custom_call.1} parent=1 // pred_check
      _
    $region15: #{tpu_custom_call.1} parent=1 // pred_check_branch
      %19 = sbr.rel (0) target = $region17
    $region16: #{tpu_custom_call.1} parent=1 // pred_region
      %s21 = ssub.s32 2048, 2048
      %22 = vsyncadd [#allocation3], %s21
      %s23 = sshll.u32 [#allocation2], 4
      %s24 = int_to_ptr.vmem [resolvable:$true] %s23
      %29 = dma.hbm_to_vmem [thread:$0]  %s3, 2048, %s24, [#allocation3], 128, 128, 8
    $region17: #{tpu_custom_call.1} parent=1 // pred_fallthru
      _
    // Predicated region
    $region18: #{tpu_custom_call.1} parent=1 // pred_check
      _
    $region19: #{tpu_custom_call.1} parent=1 // pred_check_branch
      %31 = sbr.rel (0) target = $region21
    $region20: #{tpu_custom_call.1} parent=1 // pred_region
      _
    $region21: #{tpu_custom_call.1} parent=1 // pred_fallthru
      _
    // Predicated region
    $region22: #{tpu_custom_call.1} parent=1 // pred_check
      _
    $region23: #{tpu_custom_call.1} parent=1 // pred_check_branch
      %33 = sbr.rel (0) target = $region25
    $region24: #{tpu_custom_call.1} parent=1 // pred_region
      %34 = dma.done [#allocation3], 2048
    $region25: #{tpu_custom_call.1} parent=1 // pred_fallthru
      _
    %v35 = vld [vmem:[%s0] sm:$0xff]
    %v36 = vld [vmem:[%s0 + $0x8] sm:$0xff]
    %v37 = vld [vmem:[%s0 + $0x10] sm:$0xff]
    %v38 = vld [vmem:[%s0 + $0x18] sm:$0xff]
    %v39 = vld [vmem:[%s0 + $0x20] sm:$0xff]
    %v40 = vld [vmem:[%s1] sm:$0xff]
    %v41 = vld [vmem:[%s1 + $0x8] sm:$0x1]
    %v42 = vld [vmem:[%s2] sm:$0x1]
    %v44 = vlaneseq
    %v45 = vshrl.u32 %v44, 7
    %v46 = vsub.s32 0, %v45
    %v47 = vrot.slane %v42, %v46
    %vm49 = vcmask 72704
    %v51 = vsel %vm49, %v35, 0
    %v54 = vsel %vm49, %v36, 0
    %v57 = vsel %vm49, %v37, 0
    %v60 = vsel %vm49, %v38, 0
    %v63 = vsel %vm49, %v39, 0
    %vm65 = vcmask 1040384
    %v67 = vsel %vm65, %v41, 0
    %69 = vmatprep.subr.mxu0 0.0
    %70 = vmatpush1.msra.mxu0 0.0
    %71 = vmatprep.subr.mxu0 0.0
    %72 = vmatpush1.msra.mxu0 0.0
    %73 = vmatprep.subr.mxu0 0.0
    %74 = vmatpush1.msra.mxu0 0.0
    %75 = vmatprep.subr.mxu0 0.0
    %76 = vmatpush1.msra.mxu0 0.0
    %77 = vmatprep.subr.mxu0 0.0
    %78 = vmatpush1.msra.mxu0 0.0
    %79 = vmatprep.subr.mxu0 0.0
    %80 = vmatpush1.msra.mxu0 0.0
    %81 = vmatprep.subr.mxu0 0.0
    %82 = vmatpush1.msra.mxu0 0.0
    %83 = vmatprep.subr.mxu0 0.0
    %84 = vmatpush1.msra.mxu0 0.0
    %85 = vmatprep.subr.mxu0 0.0
    %86 = vmatpush1.msra.mxu0 0.0
    %87 = vmatprep.subr.mxu0 0.0
    %88 = vmatpush1.msra.mxu0 0.0
    %89 = vmatprep.subr.mxu0 0.0
    %90 = vmatpush1.msra.mxu0 0.0
    %91 = vmatprep.subr.mxu0 0.0
    %92 = vmatpush1.msra.mxu0 0.0
    %93 = vmatprep.subr.mxu0 0.0
    %94 = vmatpush1.msra.mxu0 0.0
    %95 = vmatprep.subr.mxu0 0.0
    %96 = vmatpush1.msra.mxu0 0.0
    %97 = vmatprep.subr.mxu0 0.0
    %98 = vmatpush1.msra.mxu0 %v67
    %99 = vmatprep.subr.mxu0 0.0
    %100 = vmatpush1.msra.mxu0 %v40
    %101 = vmatprep.subr.mxu0 0.0
    %102 = vmatpush2.msra.mxu0 0.0
    %103 = vmatprep.subr.mxu0 0.0
    %104 = vmatpush2.msra.mxu0 0.0
    %105 = vmatprep.subr.mxu0 0.0
    %106 = vmatpush2.msra.mxu0 0.0
    %107 = vmatprep.subr.mxu0 0.0
    %108 = vmatpush2.msra.mxu0 0.0
    %109 = vmatprep.subr.mxu0 0.0
    %110 = vmatpush2.msra.mxu0 0.0
    %111 = vmatprep.subr.mxu0 0.0
    %112 = vmatpush2.msra.mxu0 0.0
    %113 = vmatprep.subr.mxu0 0.0
    %114 = vmatpush2.msra.mxu0 0.0
    %115 = vmatprep.subr.mxu0 0.0
    %116 = vmatpush2.msra.mxu0 0.0
    %117 = vmatprep.subr.mxu0 0.0
    %118 = vmatpush2.msra.mxu0 0.0
    %119 = vmatprep.subr.mxu0 0.0
    %120 = vmatpush2.msra.mxu0 0.0
    %121 = vmatprep.subr.mxu0 0.0
    %122 = vmatpush2.msra.mxu0 0.0
    %123 = vmatprep.subr.mxu0 0.0
    %124 = vmatpush2.msra.mxu0 0.0
    %125 = vmatprep.subr.mxu0 0.0
    %126 = vmatpush2.msra.mxu0 0.0
    %127 = vmatprep.subr.mxu0 0.0
    %128 = vmatpush2.msra.mxu0 0.0
    %129 = vmatprep.subr.mxu0 0.0
    %130 = vmatpush2.msra.mxu0 0.0
    %131 = vmatprep.subr.mxu0 0.0
    %132 = vmatpush2.msra.mxu0 0.0
    %133 = vmatprep.mubr.f32.mxu0 0.0
    %134 = vmatmul.mubr.f32.gmra.mxu0 %v51
    %v135 = vpop.f32.mrf.mxu0
    %v136 = vadd.f32 %v47, %v135
    %v137 = vpop.f32.mrf.mxu0
    %138 = vmatprep.mubr.f32.mxu0 0.0
    %139 = vmatmul.mubr.f32.gmra.mxu0 %v54
    %v140 = vpop.f32.mrf.mxu0
    %v141 = vadd.f32 %v47, %v140
    %v142 = vpop.f32.mrf.mxu0
    %143 = vmatprep.mubr.f32.mxu0 0.0
    %144 = vmatmul.mubr.f32.gmra.mxu0 %v57
    %v145 = vpop.f32.mrf.mxu0
    %v146 = vadd.f32 %v47, %v145
    %v147 = vpop.f32.mrf.mxu0
    %148 = vmatprep.mubr.f32.mxu0 0.0
    %149 = vmatmul.mubr.f32.gmra.mxu0 %v60
    %v150 = vpop.f32.mrf.mxu0
    %v151 = vadd.f32 %v47, %v150
    %v152 = vpop.f32.mrf.mxu0
    %153 = vmatprep.mubr.f32.mxu0 0.0
    %154 = vmatmul.mubr.f32.gmra.mxu0 %v63
    %v155 = vpop.f32.mrf.mxu0
    %v156 = vadd.f32 %v47, %v155
    %v157 = vpop.f32.mrf.mxu0
    %158 = vdwg.mxu0
    %v159 = vmax.f32 %v136, 0.0
    %v160 = vmax.f32 %v141, 0.0
    %v161 = vmax.f32 %v146, 0.0
    %v162 = vmax.f32 %v151, 0.0
    %v163 = vmax.f32 %v156, 0.0
    %v164 = vld [vmem:[#allocation2] sm:$0xff]
    %v165 = vld [vmem:[#allocation2 + $0x8] sm:$0xff]
    %v166 = vld [vmem:[#allocation2 + $0x10] sm:$0xff]
    %v167 = vld [vmem:[#allocation2 + $0x18] sm:$0xff]
    %v168 = vld [vmem:[#allocation2 + $0x20] sm:$0xff]
    %v169 = vld [vmem:[#allocation2 + $0x28] sm:$0xff]
    %v170 = vld [vmem:[#allocation2 + $0x30] sm:$0xff]
    %v171 = vld [vmem:[#allocation2 + $0x38] sm:$0xff]
    %v172 = vld [vmem:[#allocation2 + $0x40] sm:$0xff]
    %v173 = vld [vmem:[#allocation2 + $0x48] sm:$0xff]
    %v174 = vld [vmem:[#allocation2 + $0x50] sm:$0xff]
    %v175 = vld [vmem:[#allocation2 + $0x58] sm:$0xff]
    %v176 = vld [vmem:[#allocation2 + $0x60] sm:$0xff]
    %v177 = vld [vmem:[#allocation2 + $0x68] sm:$0xff]
    %v178 = vld [vmem:[#allocation2 + $0x70] sm:$0xff]
    %v179 = vld [vmem:[#allocation2 + $0x78] sm:$0xff]
    %v180 = vld [vmem:[%s4] sm:$0x1]
    %v182 = vlaneseq
    %v183 = vshrl.u32 %v182, 7
    %v184 = vsub.s32 0, %v183
    %v185 = vrot.slane %v180, %v184
    %187 = vmatprep.subr.mxu0 0.0
    %188 = vmatpush1.msra.mxu0 %v179
    %189 = vmatprep.subr.mxu0 0.0
    %190 = vmatpush1.msra.mxu0 %v178
    %191 = vmatprep.subr.mxu0 0.0
    %192 = vmatpush1.msra.mxu0 %v177
    %193 = vmatprep.subr.mxu0 0.0
    %194 = vmatpush1.msra.mxu0 %v176
    %195 = vmatprep.subr.mxu0 0.0
    %196 = vmatpush1.msra.mxu0 %v175
    %197 = vmatprep.subr.mxu0 0.0
    %198 = vmatpush1.msra.mxu0 %v174
    %199 = vmatprep.subr.mxu0 0.0
    %200 = vmatpush1.msra.mxu0 %v173
    %201 = vmatprep.subr.mxu0 0.0
    %202 = vmatpush1.msra.mxu0 %v172
    %203 = vmatprep.subr.mxu0 0.0
    %204 = vmatpush1.msra.mxu0 %v171
    %205 = vmatprep.subr.mxu0 0.0
    %206 = vmatpush1.msra.mxu0 %v170
    %207 = vmatprep.subr.mxu0 0.0
    %208 = vmatpush1.msra.mxu0 %v169
    %209 = vmatprep.subr.mxu0 0.0
    %210 = vmatpush1.msra.mxu0 %v168
    %211 = vmatprep.subr.mxu0 0.0
    %212 = vmatpush1.msra.mxu0 %v167
    %213 = vmatprep.subr.mxu0 0.0
    %214 = vmatpush1.msra.mxu0 %v166
    %215 = vmatprep.subr.mxu0 0.0
    %216 = vmatpush1.msra.mxu0 %v165
    %217 = vmatprep.subr.mxu0 0.0
    %218 = vmatpush1.msra.mxu0 %v164
    %219 = vmatprep.subr.mxu0 0.0
    %220 = vmatpush2.msra.mxu0 0.0
    %221 = vmatprep.subr.mxu0 0.0
    %222 = vmatpush2.msra.mxu0 0.0
    %223 = vmatprep.subr.mxu0 0.0
    %224 = vmatpush2.msra.mxu0 0.0
    %225 = vmatprep.subr.mxu0 0.0
    %226 = vmatpush2.msra.mxu0 0.0
    %227 = vmatprep.subr.mxu0 0.0
    %228 = vmatpush2.msra.mxu0 0.0
    %229 = vmatprep.subr.mxu0 0.0
    %230 = vmatpush2.msra.mxu0 0.0
    %231 = vmatprep.subr.mxu0 0.0
    %232 = vmatpush2.msra.mxu0 0.0
    %233 = vmatprep.subr.mxu0 0.0
    %234 = vmatpush2.msra.mxu0 0.0
    %235 = vmatprep.subr.mxu0 0.0
    %236 = vmatpush2.msra.mxu0 0.0
    %237 = vmatprep.subr.mxu0 0.0
    %238 = vmatpush2.msra.mxu0 0.0
    %239 = vmatprep.subr.mxu0 0.0
    %240 = vmatpush2.msra.mxu0 0.0
    %241 = vmatprep.subr.mxu0 0.0
    %242 = vmatpush2.msra.mxu0 0.0
    %243 = vmatprep.subr.mxu0 0.0
    %244 = vmatpush2.msra.mxu0 0.0
    %245 = vmatprep.subr.mxu0 0.0
    %246 = vmatpush2.msra.mxu0 0.0
    %247 = vmatprep.subr.mxu0 0.0
    %248 = vmatpush2.msra.mxu0 0.0
    %249 = vmatprep.subr.mxu0 0.0
    %250 = vmatpush2.msra.mxu0 0.0
    %251 = vmatprep.mubr.f32.mxu0 0.0
    %252 = vmatmul.mubr.f32.gmra.mxu0 %v159
    %v253 = vpop.f32.mrf.mxu0
    %v254 = vadd.f32 %v185, %v253
    %v255 = vpop.f32.mrf.mxu0
    %256 = vmatprep.mubr.f32.mxu0 0.0
    %257 = vmatmul.mubr.f32.gmra.mxu0 %v160
    %v258 = vpop.f32.mrf.mxu0
    %v259 = vadd.f32 %v185, %v258
    %v260 = vpop.f32.mrf.mxu0
    %261 = vmatprep.mubr.f32.mxu0 0.0
    %262 = vmatmul.mubr.f32.gmra.mxu0 %v161
    %v263 = vpop.f32.mrf.mxu0
    %v264 = vadd.f32 %v185, %v263
    %v265 = vpop.f32.mrf.mxu0
    %266 = vmatprep.mubr.f32.mxu0 0.0
    %267 = vmatmul.mubr.f32.gmra.mxu0 %v162
    %v268 = vpop.f32.mrf.mxu0
    %v269 = vadd.f32 %v185, %v268
    %v270 = vpop.f32.mrf.mxu0
    %271 = vmatprep.mubr.f32.mxu0 0.0
    %272 = vmatmul.mubr.f32.gmra.mxu0 %v163
    %v273 = vpop.f32.mrf.mxu0
    %v274 = vadd.f32 %v185, %v273
    %v275 = vpop.f32.mrf.mxu0
    %276 = vdwg.mxu0
    %277 = vst [vmem:[#allocation5] sm:$0xff] %v254
    %278 = vst [vmem:[#allocation5 + $0x8] sm:$0xff] %v259
    %279 = vst [vmem:[#allocation5 + $0x10] sm:$0xff] %v264
    %280 = vst [vmem:[#allocation5 + $0x18] sm:$0xff] %v269
    %281 = vst [vmem:[#allocation5 + $0x20] sm:$0xff] %v274
    // Predicated region
    $region26: #{tpu_custom_call.1} parent=1 // pred_check
      _
    $region27: #{tpu_custom_call.1} parent=1 // pred_check_branch
      %283 = sbr.rel (0) target = $region29
    $region28: #{tpu_custom_call.1} parent=1 // pred_region
      %s285 = ssub.s32 640, 640
      %286 = vsyncadd [#allocation4], %s285
      %s287 = sshll.u32 [#allocation5], 4
      %s288 = int_to_ptr.vmem [resolvable:$true] %s287
      %293 = dma.vmem_to_hbm [thread:$0]  %s288, 640, %s5, [#allocation4], 128, 128, 8
    $region29: #{tpu_custom_call.1} parent=1 // pred_fallthru
      _
    // Predicated region
    $region30: #{tpu_custom_call.1} parent=1 // pred_check
      _
    $region31: #{tpu_custom_call.1} parent=1 // pred_check_branch
      %295 = sbr.rel (0) target = $region33
    $region32: #{tpu_custom_call.1} parent=1 // pred_region
      %296 = dma.done [#allocation4], 640
    $region33: #{tpu_custom_call.1} parent=1 // pred_fallthru
      _
    %297 = vsyncpa [#allocation3], 1
    %298 = vsyncpa [#allocation4], 1

</llo_original>
